<compile_context>
chip_gen: v5e
topology: v5e:2x2
jax: 0.10.0
libtpu: 0.0.40
codegen_flags: <defaults>
</compile_context>

<pallas_src>
import functools
import math

import jax
import jax.numpy as jnp
from jax.experimental import pallas as pl
from jax.experimental.pallas import tpu as pltpu


# ----------------------------- kernels --------------------------------------

def embed_add_kernel(tok_ref, seg_ref, pos_ref, out_ref):
    # tok/seg: (TN, B, E) bf16, pos: (TN, 1, E) bf16 -> broadcast add over B.
    out_ref[...] = (tok_ref[...].astype(jnp.float32)
                    + seg_ref[...].astype(jnp.float32)
                    + pos_ref[...].astype(jnp.float32)).astype(out_ref.dtype)


def encoder_layer_kernel(x_ref, wqkv_ref, bqkv_ref, wo_ref, bo_ref,
                         ln1w_ref, ln1b_ref, w1_ref, b1_ref,
                         w2_ref, b2_ref, ln2w_ref, ln2b_ref,
                         out_ref, ctx_ref, *, num_heads):
    """One nn.TransformerEncoderLayer (post-LN, ReLU, no masks, eval mode).

    Grid = (num_S_blocks,).  One grid step processes TN independent attention
    problems of length L = B end to end.  All matmuls: bf16 operands, fp32
    MXU accumulation; softmax / layer norm / residuals in fp32.
    """
    TN, L, E = x_ref.shape
    T = TN * L
    H = num_heads
    d = E // H

    xb = x_ref[...].reshape(T, E)                     # bf16 activations

    # ---- fused QKV projection: single MXU pass, N = 3E (full lane width) ----
    # 1/sqrt(d) is folded into the q columns of wqkv/bqkv at init time.
    qkv = jnp.dot(xb, wqkv_ref[...], preferred_element_type=jnp.float32) \
        + bqkv_ref[...]                               # (T, 3E) fp32

    # ---- attention, unrolled over heads (batched over the TN problems) ------
    # TODO(synk): with d=64 the per-head lane slices are half a 128-lane tile;
    # packing two heads per einsum batch would double lane occupancy.
    for h in range(H):
        q_h = qkv[:, h * d:(h + 1) * d].reshape(TN, L, d).astype(jnp.bfloat16)
        k_h = qkv[:, E + h * d:E + (h + 1) * d].reshape(TN, L, d).astype(jnp.bfloat16)
        v_h = qkv[:, 2 * E + h * d:2 * E + (h + 1) * d].reshape(TN, L, d).astype(jnp.bfloat16)

        s = jnp.einsum('nld,nmd->nlm', q_h, k_h,
                       preferred_element_type=jnp.float32)        # (TN, L, L)
        s = s - jnp.max(s, axis=-1, keepdims=True)
        p = jnp.exp(s)
        p = p * pl.reciprocal(jnp.sum(p, axis=-1, keepdims=True), approx=True)
        ctx_h = jnp.einsum('nlm,nmd->nld', p.astype(jnp.bfloat16), v_h,
                           preferred_element_type=jnp.float32)    # (TN, L, d)
        # Concatenate head contexts into the bf16 scratch (column block h).
        ctx_ref[:, h * d:(h + 1) * d] = ctx_h.reshape(T, d).astype(jnp.bfloat16)

    # ---- single output projection: K = E (full MXU depth) -------------------
    attn = jnp.dot(ctx_ref[...], wo_ref[...],
                   preferred_element_type=jnp.float32) + bo_ref[...]

    x_f32 = xb.astype(jnp.float32)

    def layer_norm(y, w, b):
        mu = jnp.mean(y, axis=-1, keepdims=True)
        var = jnp.mean(jnp.square(y - mu), axis=-1, keepdims=True)
        return (y - mu) * jax.lax.rsqrt(var + 1e-5) * w + b

    x1 = layer_norm(x_f32 + attn, ln1w_ref[...], ln1b_ref[...])

    # ---- feed forward: bf16 operands, bf16 intermediate, fp32 epilogue ------
    h1 = jnp.dot(x1.astype(jnp.bfloat16), w1_ref[...],
                 preferred_element_type=jnp.float32) + b1_ref[...]
    h1 = jnp.maximum(h1, 0.0).astype(jnp.bfloat16)    # ReLU (PyTorch default)
    ff = jnp.dot(h1, w2_ref[...],
                 preferred_element_type=jnp.float32) + b2_ref[...]

    x_out = layer_norm(x1 + ff, ln2w_ref[...], ln2b_ref[...])
    out_ref[...] = x_out.reshape(TN, L, E).astype(out_ref.dtype)


# ----------------------------- VMEM sizing -----------------------------------

def _vmem_budget_bytes():
    """Per-core VMEM budget: ~3/4 of physical, capped at 100 MiB.
    v5e/v6e (128 MiB) -> 96 MiB; v7x (64 MiB per TensorCore) -> 48 MiB."""
    cap = 128 * 1024 * 1024
    try:
        cap = int(pltpu.get_tpu_info().vmem_capacity_bytes)
    except Exception:
        pass
    return min((cap * 3) // 4, 100 * 1024 * 1024)


def _layer_weight_vmem_bytes(E):
    """Single-copy resident weight footprint of one encoder layer.
    bf16 matrices (wqkv 3E^2 + wo E^2 + w1 4E^2 + w2 4E^2) + fp32 vectors."""
    return 24 * E * E + 48 * E


def _layer_row_vmem_bytes(B, E):
    """Conservative per-S-row VMEM footprint (bytes) inside the encoder-layer
    kernel: pipelined x/out tiles plus the large fp32/bf16 intermediates."""
    f = 4 * E
    per_token = (
        2 * 2 * E        # x tile, bf16, double-buffered
        + 2 * 2 * E      # out tile, bf16, double-buffered
        + 4 * 3 * E      # fused qkv, fp32
        + 2 * 3 * E      # bf16 per-head q/k/v copies feeding the einsums
        + 4 * B          # one row of attention scores, fp32 (L = B)
        + 2 * E          # concatenated head contexts, bf16 scratch
        + 5 * 4 * E      # attn / x_f32 / x1 / ff / x_out fp32 temps
        + 4 * f          # fp32 FFN matmul result (pre-ReLU)
        + 2 * f          # bf16 FFN intermediate h1
    )
    return B * per_token


def _pick_block_n(S, max_rows):
    """Largest divisor of S that fits the per-step VMEM budget (max_rows rows),
    capped so there are >= 2 grid steps (pipeline / megacore engage), with a
    mild preference for an even number of steps (clean 2-TensorCore split on
    v7x).  For prime/awkward S this degenerates to bn=1 (correct, but slow)."""
    bn = max(1, min(S, int(max_rows)))
    if S >= 2:
        bn = min(bn, -(-S // 2))          # cdiv(S, 2): at least 2 grid steps
    while S % bn:
        bn -= 1
    if bn > 1 and (S // bn) % 2:
        for cand in range(bn - 1, bn // 2 - 1, -1):
            if cand >= 1 and S % cand == 0 and (S // cand) % 2 == 0:
                bn = cand
                break
    return bn


# ----------------------------- wrapper ----------------------------------------

def _make_encoder_layer_call(*, bn, B, E, H, grid_n, S, compiler_params,
                             single_buffer_weights):
    def const_spec(shape):
        idx = lambda n, _nd=len(shape): (0,) * _nd
        if single_buffer_weights:
            # Constant index_map -> the second pipeline buffer is pure VMEM waste.
            return pl.BlockSpec(shape, idx, pipeline_mode=pl.Buffered(1))
        return pl.BlockSpec(shape, idx)

    xspec = pl.BlockSpec((bn, B, E), lambda n: (n, 0, 0))
    return pl.pallas_call(
        functools.partial(encoder_layer_kernel, num_heads=H),
        grid=(grid_n,),
        in_specs=[
            xspec,                          # x tile
            const_spec((E, 3 * E)),         # fused [Wq|Wk|Wv]^T (scale folded in)
            const_spec((1, 3 * E)),         # qkv bias
            const_spec((E, E)),             # Wo^T
            const_spec((1, E)),             # bo
            const_spec((1, E)),             # ln1 gamma
            const_spec((1, E)),             # ln1 beta
            const_spec((E, 4 * E)),         # W1^T
            const_spec((1, 4 * E)),         # b1
            const_spec((4 * E, E)),         # W2^T
            const_spec((1, E)),             # b2
            const_spec((1, E)),             # ln2 gamma
            const_spec((1, E)),             # ln2 beta
        ],
        out_specs=xspec,
        out_shape=jax.ShapeDtypeStruct((S, B, E), jnp.bfloat16),
        scratch_shapes=[pltpu.VMEM((bn * B, E), jnp.bfloat16)],   # head contexts
        compiler_params=compiler_params,
    )


def bert_forward(seq, seg, params, num_heads):
    B, S = seq.shape
    E = params['token_embed'].shape[1]
    H = num_heads

    # bf16 gathers with transposed indices produce activations directly in the
    # (S, B, E) attention layout (no full-tensor transpose on input).
    tok = jnp.take(params['token_embed'], seq.T, axis=0)       # (S, B, E) bf16
    sege = jnp.take(params['segment_embed'], seg.T, axis=0)    # (S, B, E) bf16
    pos = params['pos_embed'][:S][:, None, :]                  # (S, 1, E) bf16

    # --- VMEM-aware tile selection (per TPU generation) -----------------------
    vmem_budget = _vmem_budget_bytes()
    # Weights counted double-buffered so the no-single-buffering fallback path
    # still fits; with single-buffering the difference is extra headroom.
    weight_bytes = 2 * _layer_weight_vmem_bytes(E)
    row_bytes = _layer_row_vmem_bytes(B, E)
    max_rows = max(1, (vmem_budget - weight_bytes) // max(row_bytes, 1))
    bn = _pick_block_n(S, max_rows)
    grid_n = S // bn

    cparams = pltpu.CompilerParams(
        dimension_semantics=("parallel",),
        vmem_limit_bytes=int(vmem_budget))

    emap = lambda n: (n, 0, 0)
    x = pl.pallas_call(
        embed_add_kernel,
        grid=(grid_n,),
        in_specs=[
            pl.BlockSpec((bn, B, E), emap),
            pl.BlockSpec((bn, B, E), emap),
            pl.BlockSpec((bn, 1, E), emap),
        ],
        out_specs=pl.BlockSpec((bn, B, E), emap),
        out_shape=jax.ShapeDtypeStruct((S, B, E), jnp.bfloat16),
        compiler_params=cparams,
    )(tok, sege, pos)

    layer_call = None
    for lp in params['layers']:
        args = (x, lp['wqkv_t'], lp['bqkv'], lp['wo_t'], lp['bo'],
                lp['ln1w'], lp['ln1b'], lp['w1_t'], lp['b1'],
                lp['w2_t'], lp['b2'], lp['ln2w'], lp['ln2b'])
        if layer_call is None:
            try:
                layer_call = _make_encoder_layer_call(
                    bn=bn, B=B, E=E, H=H, grid_n=grid_n, S=S,
                    compiler_params=cparams, single_buffer_weights=True)
                x = layer_call(*args)
            except Exception:
                # pipeline_mode / Buffered(1) unsupported on this JAX version:
                # fall back to default double-buffered weight specs.
                layer_call = _make_encoder_layer_call(
                    bn=bn, B=B, E=E, H=H, grid_n=grid_n, S=S,
                    compiler_params=cparams, single_buffer_weights=False)
                x = layer_call(*args)
        else:
            x = layer_call(*args)

    # Back to PyTorch's (B, S, E) fp32 output layout.  The transpose reads
    # bf16 and the fp32 convert fuses with it in XLA (one memory-bound pass).
    return jnp.swapaxes(x, 0, 1).astype(jnp.float32)


# ----------------------------- parameters ------------------------------------

def init_params(key, vocab_size, n_segments, max_len, embed_dim, n_layers,
                attn_heads):
    E = embed_dim
    H = attn_heads
    d = E // H
    keys = jax.random.split(key, 3 + n_layers)
    params = {
        # Embedding stage is memory-bound: store the tables in bf16.
        'token_embed': (0.02 * jax.random.normal(keys[0], (vocab_size, E),
                                                 jnp.float32)).astype(jnp.bfloat16),
        'segment_embed': (0.02 * jax.random.normal(keys[1], (n_segments, E),
                                                   jnp.float32)).astype(jnp.bfloat16),
        'pos_embed': (0.02 * jax.random.normal(keys[2], (max_len, E),
                                               jnp.float32)).astype(jnp.bfloat16),
        'layers': [],
    }
    scale = 1.0 / math.sqrt(d)
    for i in range(n_layers):
        lk = jax.random.split(keys[3 + i], 8)
        # PyTorch layouts: in_proj_weight (3E, E), out_proj.weight (E, E),
        # linear1.weight (4E, E), linear2.weight (E, 4E); linears do x @ W.T + b.
        wqkv = 0.05 * jax.random.normal(lk[0], (3 * E, E), jnp.float32)
        bqkv = 0.01 * jax.random.normal(lk[4], (3 * E,), jnp.float32)
        wo = 0.05 * jax.random.normal(lk[1], (E, E), jnp.float32)
        w1 = 0.05 * jax.random.normal(lk[2], (4 * E, E), jnp.float32)
        w2 = 0.05 * jax.random.normal(lk[3], (E, 4 * E), jnp.float32)

        # Fused QKV weight: (E, 3E) = [Wq^T | Wk^T | Wv^T]; fold the 1/sqrt(d)
        # attention scale into the q columns (and q bias) so the kernel needs
        # no extra scaling pass.
        wqkv_t = jnp.transpose(wqkv)                       # (E, 3E)
        wqkv_t = wqkv_t.at[:, :E].multiply(scale)
        bqkv_row = bqkv.reshape(1, 3 * E)
        bqkv_row = bqkv_row.at[:, :E].multiply(scale)

        params['layers'].append({
            # MXU operands stored in bf16; biases / LN params stay fp32.
            'wqkv_t': wqkv_t.astype(jnp.bfloat16),                 # (E, 3E)
            'bqkv': bqkv_row,                                      # (1, 3E) fp32
            'wo_t': jnp.transpose(wo).astype(jnp.bfloat16),        # (E, E)
            'bo': 0.01 * jax.random.normal(lk[5], (1, E), jnp.float32),
            'ln1w': jnp.ones((1, E), jnp.float32),
            'ln1b': jnp.zeros((1, E), jnp.float32),
            'w1_t': jnp.transpose(w1).astype(jnp.bfloat16),        # (E, 4E)
            'b1': 0.01 * jax.random.normal(lk[6], (1, 4 * E), jnp.float32),
            'w2_t': jnp.transpose(w2).astype(jnp.bfloat16),        # (4E, E)
            'b2': 0.01 * jax.random.normal(lk[7], (1, E), jnp.float32),
            'ln2w': jnp.ones((1, E), jnp.float32),
            'ln2b': jnp.zeros((1, E), jnp.float32),
        })
    return params


# ----------------------------- main -------------------------------------------

if __name__ == "__main__":
    vocab_size, n_segments, max_len = 50, 2, 16
    embed_dim, n_layers, attn_heads, dropout = 32, 2, 4, 0.1
    B, S = 2, 8

    key = jax.random.PRNGKey(0)
    k_seq, k_seg, k_par = jax.random.split(key, 3)
    seq = jax.random.randint(k_seq, (B, S), 0, vocab_size, dtype=jnp.int32)
    seg = jax.random.randint(k_seg, (B, S), 0, n_segments, dtype=jnp.int32)

    params = init_params(k_par, vocab_size, n_segments, max_len, embed_dim,
                         n_layers, attn_heads)

    out = bert_forward(seq, seg, params, attn_heads)
    out = jax.block_until_ready(out)
    assert out.shape == (B, S, embed_dim), out.shape
    assert jnp.all(jnp.isfinite(out))
    print("KERNEL_OK")
</pallas_src>

<mosaic_0001>
module attributes {stable_mosaic.version = 11 : i64} {
  func.func @embed_add_kernel(%arg0: i32, %arg1: memref<4x2x32xbf16, #tpu.memory_space<vmem>>, %arg2: memref<4x2x32xbf16, #tpu.memory_space<vmem>>, %arg3: memref<4x1x32xbf16, #tpu.memory_space<vmem>>, %arg4: memref<4x2x32xbf16, #tpu.memory_space<vmem>>) attributes {dimension_semantics = [#tpu.dimension_semantics<parallel>], iteration_bounds = array<i64: 2>, scalar_prefetch = 0 : i64, scratch_operands = 0 : i64, tpu.core_type = #tpu.core_type<tc>, window_params = [{transform_indices = @transform_0, window_bounds = array<i64: 4, 2, 32>}, {transform_indices = @transform_1, window_bounds = array<i64: 4, 2, 32>}, {transform_indices = @transform_2, window_bounds = array<i64: 4, 1, 32>}, {transform_indices = @transform_3, window_bounds = array<i64: 4, 2, 32>}]} {
    %c0 = arith.constant 0 : index
    %c0_0 = arith.constant 0 : index
    %c0_1 = arith.constant 0 : index
    %0 = vector.load %arg1[%c0, %c0_0, %c0_1] : memref<4x2x32xbf16, #tpu.memory_space<vmem>>, vector<4x2x32xbf16>
    %1 = arith.extf %0 : vector<4x2x32xbf16> to vector<4x2x32xf32>
    %c0_2 = arith.constant 0 : index
    %c0_3 = arith.constant 0 : index
    %c0_4 = arith.constant 0 : index
    %2 = vector.load %arg2[%c0_2, %c0_3, %c0_4] : memref<4x2x32xbf16, #tpu.memory_space<vmem>>, vector<4x2x32xbf16>
    %3 = arith.extf %2 : vector<4x2x32xbf16> to vector<4x2x32xf32>
    %4 = arith.addf %1, %3 : vector<4x2x32xf32>
    %c0_5 = arith.constant 0 : index
    %c0_6 = arith.constant 0 : index
    %c0_7 = arith.constant 0 : index
    %5 = vector.load %arg3[%c0_5, %c0_6, %c0_7] : memref<4x1x32xbf16, #tpu.memory_space<vmem>>, vector<4x1x32xbf16>
    %6 = arith.extf %5 : vector<4x1x32xbf16> to vector<4x1x32xf32>
    %7 = vector.broadcast %6 : vector<4x1x32xf32> to vector<4x2x32xf32>
    %8 = arith.addf %4, %7 : vector<4x2x32xf32>
    %9 = arith.truncf %8 : vector<4x2x32xf32> to vector<4x2x32xbf16>
    %c0_8 = arith.constant 0 : index
    %c0_9 = arith.constant 0 : index
    %c0_10 = arith.constant 0 : index
    %10 = vector.load %arg4[%c0_8, %c0_9, %c0_10] : memref<4x2x32xbf16, #tpu.memory_space<vmem>>, vector<4x2x32xbf16>
    tpu.vector_store %arg4[%c0_8, %c0_9, %c0_10], %9 {strides = array<i32>} : memref<4x2x32xbf16, #tpu.memory_space<vmem>>, vector<4x2x32xbf16>,
    return
  }
  func.func @transform_0(%arg0: i32) -> (i32, i32, i32) {
    %c0_i32 = arith.constant 0 : i32
    %c0_i32_0 = arith.constant 0 : i32
    %c0_i32_1 = arith.constant 0 : i32
    return %arg0, %c0_i32, %c0_i32_0 : i32, i32, i32
  }
  func.func @transform_1(%arg0: i32) -> (i32, i32, i32) {
    %c0_i32 = arith.constant 0 : i32
    %c0_i32_0 = arith.constant 0 : i32
    %c0_i32_1 = arith.constant 0 : i32
    return %arg0, %c0_i32, %c0_i32_0 : i32, i32, i32
  }
  func.func @transform_2(%arg0: i32) -> (i32, i32, i32) {
    %c0_i32 = arith.constant 0 : i32
    %c0_i32_0 = arith.constant 0 : i32
    %c0_i32_1 = arith.constant 0 : i32
    return %arg0, %c0_i32, %c0_i32_0 : i32, i32, i32
  }
  func.func @transform_3(%arg0: i32) -> (i32, i32, i32) {
    %c0_i32 = arith.constant 0 : i32
    %c0_i32_0 = arith.constant 0 : i32
    %c0_i32_1 = arith.constant 0 : i32
    return %arg0, %c0_i32, %c0_i32_0 : i32, i32, i32
  }
}

</mosaic_0001>

<llo_original>
// kernel: tpu_custom_call.1
$region0: #{tpu_custom_call.1}
  #allocation0 [shape = 'u32[]', space=smem, size = 0x4, offset = 0x4, fixed_abs, tag = 'smem constant byte address 0x4 - core index']
  #allocation1 [shape = 'u32[72,128]{1,0:T(1,128)}', space=vmem, size = 0x9000, scoped, tag = 'internal scratch']
  %s0 = inlined_call_operand.vmem [shape: bf16[8,2,32], index: 0, kind: input, shape index: {}]
  %s1 = inlined_call_operand.hbm [shape: bf16[8,2,32], index: 1, kind: input, shape index: {}]
  %s2 = inlined_call_operand.vmem [shape: bf16[8,1,32], index: 2, kind: input, shape index: {}]
  %s3 = inlined_call_operand.hbm [shape: bf16[8,2,32], index: 3, kind: output, shape index: {}]
  %s4 = sld [smem:[#allocation0]]
  $region49: #{tpu_custom_call.1} parent=0
    _
  %s6 = ssub.s32 1, %s4
  %s7 = scalar_select 0, %s6, %s4
  $region1: #{tpu_custom_call.1} parent=0
    #allocation2 [shape = 'u8[4096]{0}', space=vmem, size = 0x1000, scoped, tag = 'input window, operand 1']
    #allocation3 [shape = 's32[2]{0}', space=sflag, size = 0x8, scoped, tag = 'scoped memory for tpu_custom_call.1']
    #allocation4 [shape = 's32[2]{0}', space=sflag, size = 0x8, scoped, tag = 'scoped memory for tpu_custom_call.1']
    #allocation5 [shape = 'u8[4096]{0}', space=vmem, size = 0x1000, scoped, tag = 'output window, operand 0']
    %8 = vsyncpa [#allocation3], 0
    %s9 = scalar_lea.sflag [#allocation3], 1
    %10 = vsyncpa %s9, 0
    %11 = vsyncpa [#allocation4], 0
    %s12 = scalar_lea.sflag [#allocation4], 1
    %13 = vsyncpa %s12, 0
    loop: start=0, step=1, limit=4
    $region2: #{tpu_custom_call.1} parent=1 // loop_pre_header
      _
    $region3: #{tpu_custom_call.1} parent=1 // loop_header
      %s15 = sphi 0, %s19
      %p16 = scmp.ge.s32.totalorder %s15, 4
      %s25 = sphi 0, %s27
      %s28 = sphi 0, %s25
      %s29 = sphi 0, %s28
      %s45 = sphi 0, %s29
      %s51 = sphi 0, %s53
      %s54 = sphi 0, %s51
      %s55 = sphi 0, %s54
      %s71 = sphi 0, %s55
      %s77 = sphi 0, %s79
      %s80 = sphi 0, %s77
      %s81 = sphi 0, %s80
      %s97 = sphi 0, %s81
      %s103 = sphi 0, %s105
      %s106 = sphi 0, %s103
      %s107 = sphi 0, %s106
      %s123 = sphi 0, %s107
    $region4: #{tpu_custom_call.1} parent=1 // loop_header_branch
      %18 = sbr.rel (%p16) target = $region8
    $region5: #{tpu_custom_call.1} parent=1 // loop_body
      %s20 = ssub.s32 %s15, 1
      %s21 = ssub.s32 %s15, 2
      %s22 = sadd.s32 %s15, 1
      %s23 = ssub.s32 %s15, %s22
      %p24 = scmp.eq.s32.totalorder %s23, 0
      %s26 = sadd.s32 %s25, 1
      %s27 = scalar_select %p24, %s25, %s26
      %p30 = pneg %p24
      %p31 = scmp.eq.s32.totalorder %s15, 1
      %p32 = por %p30, %p31
      %p33 = scmp.ne.s32.totalorder %s25, %s28
      %p34 = scmp.eq.s32.totalorder %s15, 0
      %p35 = por %p33, %p34
      %p36 = scmp.ne.s32.totalorder %s25, %s28
      %p37 = scmp.eq.s32.totalorder %s20, 1
      %p38 = por %p36, %p37
      %p39 = scmp.ne.s32.totalorder %s28, %s29
      %p40 = scmp.eq.s32.totalorder %s20, 0
      %p41 = por %p39, %p40
      %p42 = scmp.ne.s32.totalorder %s28, %s29
      %p43 = scmp.eq.s32.totalorder %s21, 1
      %p44 = por %p42, %p43
      %p46 = scmp.ne.s32.totalorder %s29, %s45
      %p47 = scmp.eq.s32.totalorder %s21, 0
      %p48 = por %p46, %p47
      %s49 = ssub.s32 %s15, %s22
      %p50 = scmp.eq.s32.totalorder %s49, 0
      %s52 = sadd.s32 %s51, 1
      %s53 = scalar_select %p50, %s51, %s52
      %p56 = pneg %p50
      %p57 = scmp.eq.s32.totalorder %s15, 1
      %p58 = por %p56, %p57
      %p59 = scmp.ne.s32.totalorder %s51, %s54
      %p60 = scmp.eq.s32.totalorder %s15, 0
      %p61 = por %p59, %p60
      %p62 = scmp.ne.s32.totalorder %s51, %s54
      %p63 = scmp.eq.s32.totalorder %s20, 1
      %p64 = por %p62, %p63
      %p65 = scmp.ne.s32.totalorder %s54, %s55
      %p66 = scmp.eq.s32.totalorder %s20, 0
      %p67 = por %p65, %p66
      %p68 = scmp.ne.s32.totalorder %s54, %s55
      %p69 = scmp.eq.s32.totalorder %s21, 1
      %p70 = por %p68, %p69
      %p72 = scmp.ne.s32.totalorder %s55, %s71
      %p73 = scmp.eq.s32.totalorder %s21, 0
      %p74 = por %p72, %p73
      %s75 = ssub.s32 %s15, %s22
      %p76 = scmp.eq.s32.totalorder %s75, 0
      %s78 = sadd.s32 %s77, 1
      %s79 = scalar_select %p76, %s77, %s78
      %p82 = pneg %p76
      %p83 = scmp.eq.s32.totalorder %s15, 1
      %p84 = por %p82, %p83
      %p85 = scmp.ne.s32.totalorder %s77, %s80
      %p86 = scmp.eq.s32.totalorder %s15, 0
      %p87 = por %p85, %p86
      %p88 = scmp.ne.s32.totalorder %s77, %s80
      %p89 = scmp.eq.s32.totalorder %s20, 1
      %p90 = por %p88, %p89
      %p91 = scmp.ne.s32.totalorder %s80, %s81
      %p92 = scmp.eq.s32.totalorder %s20, 0
      %p93 = por %p91, %p92
      %p94 = scmp.ne.s32.totalorder %s80, %s81
      %p95 = scmp.eq.s32.totalorder %s21, 1
      %p96 = por %p94, %p95
      %p98 = scmp.ne.s32.totalorder %s81, %s97
      %p99 = scmp.eq.s32.totalorder %s21, 0
      %p100 = por %p98, %p99
      %s101 = ssub.s32 %s15, %s22
      %p102 = scmp.eq.s32.totalorder %s101, 0
      %s104 = sadd.s32 %s103, 1
      %s105 = scalar_select %p102, %s103, %s104
      %p108 = pneg %p102
      %p109 = scmp.eq.s32.totalorder %s15, 1
      %p110 = por %p108, %p109
      %p111 = scmp.ne.s32.totalorder %s103, %s106
      %p112 = scmp.eq.s32.totalorder %s15, 0
      %p113 = por %p111, %p112
      %p114 = scmp.ne.s32.totalorder %s103, %s106
      %p115 = scmp.eq.s32.totalorder %s20, 1
      %p116 = por %p114, %p115
      %p117 = scmp.ne.s32.totalorder %s106, %s107
      %p118 = scmp.eq.s32.totalorder %s20, 0
      %p119 = por %p117, %p118
      %p120 = scmp.ne.s32.totalorder %s106, %s107
      %p121 = scmp.eq.s32.totalorder %s21, 1
      %p122 = por %p120, %p121
      %p124 = scmp.ne.s32.totalorder %s107, %s123
      %p125 = scmp.eq.s32.totalorder %s21, 0
      %p126 = por %p124, %p125
      %p127 = scmp.le.s32.totalorder 1, %s15
      %p128 = scmp.lt.s32.totalorder %s15, 3
      %p129 = pnand %p127, %p128
      %p130 = pneg %p129
      // Predicated region
      $region9: #{tpu_custom_call.1} parent=5 // pred_check
        _
      $region10: #{tpu_custom_call.1} parent=5 // pred_check_branch
        %132 = sbr.rel (%p129) target = $region12
      $region11: #{tpu_custom_call.1} parent=5 // pred_region
        %s133 = ssub.s32 %s15, 1
      $region12: #{tpu_custom_call.1} parent=5 // pred_fallthru
        _
      %p134 = scmp.lt.s32.totalorder %s15, 2
      // Predicated region
      $region13: #{tpu_custom_call.1} parent=5 // pred_check
        %p135 = pneg %p134
      $region14: #{tpu_custom_call.1} parent=5 // pred_check_branch
        %137 = sbr.rel (%p135) target = $region16
      $region15: #{tpu_custom_call.1} parent=5 // pred_region
        // Predicated region
        $region17: #{tpu_custom_call.1} parent=15 // pred_check
          %p138 = pneg %p35
        $region18: #{tpu_custom_call.1} parent=15 // pred_check_branch
          %140 = sbr.rel (%p138) target = $region20
        $region19: #{tpu_custom_call.1} parent=15 // pred_region
          %s141 = smul.u32 4, %s15
          %p142 = scmp.lt.s32.totalorder %s141, 7
          %s143 = scalar_select %p142, %s141, 7
          %s144 = scalar_lea.vmem %s0, %s143
          %s145 = smul.u32 4, %s15
        $region20: #{tpu_custom_call.1} parent=15 // pred_fallthru
          _
        // Predicated region
        $region21: #{tpu_custom_call.1} parent=15 // pred_check
          %p146 = pneg %p61
        $region22: #{tpu_custom_call.1} parent=15 // pred_check_branch
          %148 = sbr.rel (%p146) target = $region24
        $region23: #{tpu_custom_call.1} parent=15 // pred_region
          %s149 = sand.u32 %s51, 1
          %s150 = scalar_lea.sflag [#allocation3], %s149
          %s151 = sand.u32 %s51, 1
          %s152 = smul.addr %s151, 4
          %s153 = scalar_lea.vmem [#allocation2], %s152
          %s154 = smul.u32 4, %s15
          %156 = vsyncadd %s150, 0
          %s157 = scalar_lea.hbm %s1, %s154
          %s158 = sshll.u32 %s157, 4
          %s159 = int_to_ptr.hbm [resolvable:$true] %s158
          %s160 = sshll.u32 %s153, 4
          %s161 = int_to_ptr.vmem [resolvable:$true] %s160
          %166 = dma.hbm_to_vmem [thread:$0]  %s159, 64, %s161, %s150, 16, 16, 1
        $region24: #{tpu_custom_call.1} parent=15 // pred_fallthru
          _
        // Predicated region
        $region25: #{tpu_custom_call.1} parent=15 // pred_check
          %p167 = pneg %p87
        $region26: #{tpu_custom_call.1} parent=15 // pred_check_branch
          %169 = sbr.rel (%p167) target = $region28
        $region27: #{tpu_custom_call.1} parent=15 // pred_region
          %s170 = smul.u32 4, %s15
          %p171 = scmp.lt.s32.totalorder %s170, 7
          %s172 = scalar_select %p171, %s170, 7
          %s173 = scalar_lea.vmem %s2, %s172
          %s174 = smul.u32 4, %s15
        $region28: #{tpu_custom_call.1} parent=15 // pred_fallthru
          _
      $region16: #{tpu_custom_call.1} parent=5 // pred_fallthru
        _
      %p175 = scmp.le.s32.totalorder 1, %s15
      %p176 = scmp.lt.s32.totalorder %s15, 3
      %p177 = pnand %p175, %p176
      %p178 = pneg %p177
      // Predicated region
      $region29: #{tpu_custom_call.1} parent=5 // pred_check
        _
      $region30: #{tpu_custom_call.1} parent=5 // pred_check_branch
        %180 = sbr.rel (%p177) target = $region32
      $region31: #{tpu_custom_call.1} parent=5 // pred_region
        %s181 = ssub.s32 %s15, 1
        %s182 = sand.u32 %s54, 1
        %s183 = scalar_lea.sflag [#allocation3], %s182
        %s184 = sand.u32 %s54, 1
        %s185 = smul.addr %s184, 4
        %s186 = scalar_lea.vmem [#allocation2], %s185
        // Predicated region
        $region33: #{tpu_custom_call.1} parent=31 // pred_check
          %p187 = pneg %p67
        $region34: #{tpu_custom_call.1} parent=31 // pred_check_branch
          %189 = sbr.rel (%p187) target = $region36
        $region35: #{tpu_custom_call.1} parent=31 // pred_region
          %191 = dma.done %s183, 64
        $region36: #{tpu_custom_call.1} parent=31 // pred_fallthru
          _
        %s192 = smul.u32 4, %s20
        %p193 = scmp.lt.s32.totalorder %s192, 7
        %s194 = scalar_select %p193, %s192, 7
        %s195 = scalar_lea.vmem %s0, %s194
        %p196 = pneg %p41
        %p197 = pneg %p38
        %s198 = sand.u32 %s54, 1
        %s199 = scalar_lea.sflag [#allocation3], %s198
        %s200 = sand.u32 %s54, 1
        %s201 = smul.addr %s200, 4
        %s202 = scalar_lea.vmem [#allocation2], %s201
        %p203 = pneg %p67
        %p204 = pneg %p64
        %s205 = smul.u32 4, %s20
        %p206 = scmp.lt.s32.totalorder %s205, 7
        %s207 = scalar_select %p206, %s205, 7
        %s208 = scalar_lea.vmem %s2, %s207
        %p209 = pneg %p93
        %p210 = pneg %p90
        %p211 = pneg %p119
        %p212 = pneg %p116
        %s213 = sand.u32 %s106, 1
        %s214 = scalar_lea.sflag [#allocation4], %s213
        %s215 = sand.u32 %s106, 1
        %s216 = smul.addr %s215, 4
        %s217 = scalar_lea.vmem [#allocation5], %s216
        %s218 = smul.u32 4, %s20
        %p219 = scmp.lt.s32.totalorder %s218, 7
        %s220 = scalar_select %p219, %s218, 7
        %s221 = scalar_lea.vmem %s0, %s220
        %s222 = smul.u32 4, %s20
        %s223 = smul.u32 4, %s20
        %s224 = smul.u32 4, %s20
        %p225 = scmp.lt.s32.totalorder %s224, 7
        %s226 = scalar_select %p225, %s224, 7
        %s227 = scalar_lea.vmem %s2, %s226
        %s228 = smul.u32 4, %s20
        %s229 = smul.u32 4, %s20
        %v230 = vld [vmem:[%s221] sm:$0x1]
        %v231 = vld [vmem:[%s221 + $0x1] sm:$0x1]
        %v232 = vld [vmem:[%s221 + $0x2] sm:$0x1]
        %v233 = vld [vmem:[%s221 + $0x3] sm:$0x1]
        %v234 = vunpack.c.l.bf16 %v230
        %v235 = vunpack.c.l.bf16 %v231
        %v236 = vunpack.c.l.bf16 %v232
        %v237 = vunpack.c.l.bf16 %v233
        %v238 = vld [vmem:[%s186] sm:$0x1]
        %v239 = vld [vmem:[%s186 + $0x1] sm:$0x1]
        %v240 = vld [vmem:[%s186 + $0x2] sm:$0x1]
        %v241 = vld [vmem:[%s186 + $0x3] sm:$0x1]
        %v242 = vunpack.c.l.bf16 %v238
        %v243 = vunpack.c.l.bf16 %v239
        %v244 = vunpack.c.l.bf16 %v240
        %v245 = vunpack.c.l.bf16 %v241
        %v246 = vadd.f32 %v234, %v242
        %v247 = vadd.f32 %v235, %v243
        %v248 = vadd.f32 %v236, %v244
        %v249 = vadd.f32 %v237, %v245
        %v250 = vld [vmem:[%s227] sm:$0x1]
        %v251 = vld [vmem:[%s227 + $0x1] sm:$0x1]
        %v252 = vld [vmem:[%s227 + $0x2] sm:$0x1]
        %v253 = vld [vmem:[%s227 + $0x3] sm:$0x1]
        %v254 = vunpack.c.l.bf16 %v250
        %v255 = vunpack.c.l.bf16 %v251
        %v256 = vunpack.c.l.bf16 %v252
        %v257 = vunpack.c.l.bf16 %v253
        %v258 = vperm.slane %v254, 0
        %v259 = vperm.slane %v255, 0
        %v260 = vperm.slane %v256, 0
        %v261 = vperm.slane %v257, 0
        %v262 = vadd.f32 %v246, %v258
        %v263 = vadd.f32 %v247, %v259
        %v264 = vadd.f32 %v248, %v260
        %v265 = vadd.f32 %v249, %v261
        %v266 = vpack.c.bf16 %v262, %v262
        %v267 = vpack.c.bf16 %v263, %v263
        %v268 = vpack.c.bf16 %v264, %v264
        %v269 = vpack.c.bf16 %v265, %v265
        %vm270 = vcmask 253952
        %271 = vst.msk [vmem:[%s217] sm:$0x1] %vm270, %v266
        %272 = vst.msk [vmem:[%s217 + $0x1] sm:$0x1] %vm270, %v267
        %273 = vst.msk [vmem:[%s217 + $0x2] sm:$0x1] %vm270, %v268
        %274 = vst.msk [vmem:[%s217 + $0x3] sm:$0x1] %vm270, %v269
        %s275 = sand.u32 %s106, 1
        %s276 = scalar_lea.sflag [#allocation4], %s275
        %s277 = sand.u32 %s106, 1
        %s278 = smul.addr %s277, 4
        %s279 = scalar_lea.vmem [#allocation5], %s278
        // Predicated region
        $region37: #{tpu_custom_call.1} parent=31 // pred_check
          %p280 = pneg %p116
        $region38: #{tpu_custom_call.1} parent=31 // pred_check_branch
          %282 = sbr.rel (%p280) target = $region40
        $region39: #{tpu_custom_call.1} parent=31 // pred_region
          %s283 = smul.u32 4, %s20
          %285 = vsyncadd %s276, 0
          %s286 = scalar_lea.hbm %s3, %s283
          %s287 = sshll.u32 %s279, 4
          %s288 = int_to_ptr.vmem [resolvable:$true] %s287
          %s289 = sshll.u32 %s286, 4
          %s290 = int_to_ptr.hbm [resolvable:$true] %s289
          %295 = dma.vmem_to_hbm [thread:$0]  %s288, 64, %s290, %s276, 16, 16, 1
        $region40: #{tpu_custom_call.1} parent=31 // pred_fallthru
          _
      $region32: #{tpu_custom_call.1} parent=5 // pred_fallthru
        _
      %p296 = scmp.le.s32.totalorder 2, %s15
      // Predicated region
      $region41: #{tpu_custom_call.1} parent=5 // pred_check
        %p297 = pneg %p296
      $region42: #{tpu_custom_call.1} parent=5 // pred_check_branch
        %299 = sbr.rel (%p297) target = $region44
      $region43: #{tpu_custom_call.1} parent=5 // pred_region
        %s300 = ssub.s32 %s15, 2
        // Predicated region
        $region45: #{tpu_custom_call.1} parent=43 // pred_check
          %p301 = pneg %p122
        $region46: #{tpu_custom_call.1} parent=43 // pred_check_branch
          %303 = sbr.rel (%p301) target = $region48
        $region47: #{tpu_custom_call.1} parent=43 // pred_region
          %s304 = sand.u32 %s107, 1
          %s305 = scalar_lea.sflag [#allocation4], %s304
          %s306 = sand.u32 %s107, 1
          %s307 = smul.addr %s306, 4
          %s308 = scalar_lea.vmem [#allocation5], %s307
          %310 = dma.done %s305, 64
        $region48: #{tpu_custom_call.1} parent=43 // pred_fallthru
          _
      $region44: #{tpu_custom_call.1} parent=5 // pred_fallthru
        _
    $region6: #{tpu_custom_call.1} parent=1 // loop_footer
      %s19 = sadd.s32 1, %s15
    $region7: #{tpu_custom_call.1} parent=1 // loop_footer_branch
      %14 = sbr.rel target = $region3
    $region8: #{tpu_custom_call.1} parent=1 // loop_exit
      _
    %311 = vsyncpa [#allocation3], 1
    %s312 = scalar_lea.sflag [#allocation3], 1
    %313 = vsyncpa %s312, 1
    %314 = vsyncpa [#allocation4], 1
    %s315 = scalar_lea.sflag [#allocation4], 1
    %316 = vsyncpa %s315, 1

</llo_original>
